<compile_context>
chip_gen: v5e
topology: v5e:2x2
jax: 0.10.0
libtpu: 0.0.40
codegen_flags: <defaults>
</compile_context>

<pallas_src>
import jax
import jax.numpy as jnp
from jax.experimental import pallas as pl
from jax.experimental.pallas import tpu as pltpu


def cond_norm_fma_kernel(seq_ref, escale_ref, bias_ref, out_ref):
    # seq_ref/out_ref: (TB, TL, lane); escale_ref/bias_ref: (TB, 1, lane).
    # Pure VPU FMA; exp(scale)/bias broadcast over the TL (sublane) axis.
    out_ref[...] = seq_ref[...] * escale_ref[...] + bias_ref[...]


def _cdiv(a, b):
    return -(-a // b)


def _choose_tiles(B, n_rows, lane, itemsize, target_bytes, min_steps=4):
    """Pick (TB, TL) with TL a multiple of 8 (or == n_rows), tile ~= target_bytes,
    and at least `min_steps` grid steps when the problem allows it."""
    row_bytes = lane * itemsize
    max_rows = max(8, ((target_bytes // max(1, row_bytes)) // 8) * 8)

    if n_rows <= max_rows:
        tl = n_rows                                   # full row extent in one tile
        tb = max(1, min(B, target_bytes // max(1, n_rows * row_bytes)))
    else:
        tl = max_rows                                 # multiple of 8; last block partial
        tb = 1

    def steps(tb_, tl_):
        return _cdiv(B, tb_) * _cdiv(n_rows, tl_)

    # Guarantee enough steps for megacore sharding (v7x: 2 TCs) and pipelining.
    while steps(tb, tl) < min_steps:
        if tb > 1:
            tb = max(1, tb // 2)
        else:
            new_tl = max(8, ((tl // 2) // 8) * 8)
            if new_tl >= tl or n_rows <= 8:
                break
            tl = new_tl
    return tb, tl


def cond_norm2(seq, c, w_scale, b_scale, w_bias, b_bias,
               target_tile_bytes=4 << 20):
    """seq: (B, L, H), c: (B, C), w_*: (C, H) [stored transposed], b_*: (H,)."""
    B, L, H = seq.shape

    # ---- Hoisted tiny projections: ONE fused XLA matmul for scale & bias, then exp.
    cf = c.astype(jnp.float32)
    w_cat = jnp.concatenate(
        [w_scale.astype(jnp.float32), w_bias.astype(jnp.float32)], axis=1)   # (C, 2H)
    b_cat = jnp.concatenate(
        [b_scale.astype(jnp.float32), b_bias.astype(jnp.float32)], axis=0)   # (2H,)
    proj = cf @ w_cat + b_cat                                                # (B, 2H)
    escale = jnp.exp(proj[:, :H]).astype(seq.dtype)
    bias = proj[:, H:].astype(seq.dtype)

    # ---- Lane-dense layout: fold, or pad, so the last dim is a multiple of 128.
    if H % 128 == 0:
        G, Hp, Lp = 1, H, L
    elif H < 128 and 128 % H == 0:
        G = 128 // H
        Hp = H
        Lp = _cdiv(L, G) * G                # pad L so it folds cleanly
    else:
        G = 1
        Hp = _cdiv(H, 128) * 128            # pad H up to a multiple of 128
        Lp = L

    seq_p = seq
    if Hp != H:
        seq_p = jnp.pad(seq_p, ((0, 0), (0, 0), (0, Hp - H)))
        escale = jnp.pad(escale, ((0, 0), (0, Hp - H)))
        bias = jnp.pad(bias, ((0, 0), (0, Hp - H)))
    if Lp != L:
        seq_p = jnp.pad(seq_p, ((0, 0), (0, Lp - L), (0, 0)))

    n_rows = Lp // G
    lane = G * Hp
    seq_f = seq_p.reshape(B, n_rows, lane)
    escale_f = jnp.tile(escale, (1, G)).reshape(B, 1, lane)
    bias_f = jnp.tile(bias, (1, G)).reshape(B, 1, lane)

    itemsize = jnp.dtype(seq.dtype).itemsize
    tb, tl = _choose_tiles(B, n_rows, lane, itemsize, target_tile_bytes)
    grid = (_cdiv(B, tb), _cdiv(n_rows, tl))

    out = pl.pallas_call(
        cond_norm_fma_kernel,
        out_shape=jax.ShapeDtypeStruct((B, n_rows, lane), seq.dtype),
        grid_spec=pltpu.PrefetchScalarGridSpec(
            num_scalar_prefetch=0,
            grid=grid,
            in_specs=[
                pl.BlockSpec((tb, tl, lane), lambda bi, li: (bi, li, 0)),  # seq tile
                pl.BlockSpec((tb, 1, lane), lambda bi, li: (bi, 0, 0)),    # exp(scale)
                pl.BlockSpec((tb, 1, lane), lambda bi, li: (bi, 0, 0)),    # bias
            ],
            out_specs=pl.BlockSpec((tb, tl, lane), lambda bi, li: (bi, li, 0)),
        ),
        compiler_params=pltpu.CompilerParams(
            dimension_semantics=("parallel", "parallel"),
            vmem_limit_bytes=40 << 20,
        ),
    )(seq_f, escale_f, bias_f)

    out = out.reshape(B, Lp, Hp)
    if Lp != L or Hp != H:
        out = out[:, :L, :H]
    return out


def cond_norm2_ref(seq, c, w_scale, b_scale, w_bias, b_bias):
    scale = c.astype(jnp.float32) @ w_scale + b_scale          # (B, H)
    bias = c.astype(jnp.float32) @ w_bias + b_bias             # (B, H)
    out = seq.astype(jnp.float32) * jnp.exp(scale)[:, None, :] + bias[:, None, :]
    return out


def _make_inputs(key, B, L, H, C, dtype=jnp.float32):
    k_seq, k_c, k_ws, k_bs, k_wb, k_bb = jax.random.split(key, 6)
    seq = jax.random.normal(k_seq, (B, L, H), jnp.float32).astype(dtype)
    c = jax.random.normal(k_c, (B, C), jnp.float32).astype(dtype)
    # nn.Linear default init: U(-1/sqrt(cdim), 1/sqrt(cdim)).
    bound = 1.0 / float(C) ** 0.5
    w_scale = jax.random.uniform(k_ws, (C, H), jnp.float32, -bound, bound)
    b_scale = jax.random.uniform(k_bs, (H,), jnp.float32, -bound, bound)
    w_bias = jax.random.uniform(k_wb, (C, H), jnp.float32, -bound, bound)
    b_bias = jax.random.uniform(k_bb, (H,), jnp.float32, -bound, bound)
    return seq, c, w_scale, b_scale, w_bias, b_bias


if __name__ == "__main__":
    key = jax.random.PRNGKey(0)

    # 1) Small shape consistent with the module (lane-fold path: H=32 -> G=4, lane=128).
    B, L, H, C = 2, 8, 32, 16
    args = _make_inputs(key, B, L, H, C)
    out = jax.block_until_ready(cond_norm2(*args))
    ref = cond_norm2_ref(*args)
    assert out.shape == (B, L, H)
    assert jnp.allclose(out, ref, atol=1e-5, rtol=1e-5), "mismatch (small / lane-fold)"

    # 2) Awkward dims: H=48 (pad to 128), L=300, B=3; small tile budget forces a
    #    multi-step grid with partial blocks on both axes.
    args2 = _make_inputs(jax.random.PRNGKey(1), 3, 300, 48, 16)
    out2 = jax.block_until_ready(cond_norm2(*args2, target_tile_bytes=64 * 1024))
    ref2 = cond_norm2_ref(*args2)
    assert out2.shape == (3, 300, 48)
    assert jnp.allclose(out2, ref2, atol=1e-5, rtol=1e-5), "mismatch (padded/partial)"

    # 3) Batch-packing path + min-steps split (B=8, L=16, H=128 lane-dense).
    args3 = _make_inputs(jax.random.PRNGKey(2), 8, 16, 128, 16)
    out3 = jax.block_until_ready(cond_norm2(*args3))
    ref3 = cond_norm2_ref(*args3)
    assert jnp.allclose(out3, ref3, atol=1e-5, rtol=1e-5), "mismatch (batch-pack)"

    # 4) bf16 inputs (FMA in bf16, projections in f32) with bf16-appropriate tolerance.
    args4 = _make_inputs(jax.random.PRNGKey(3), 2, 256, 128, 16, dtype=jnp.bfloat16)
    out4 = jax.block_until_ready(cond_norm2(*args4))
    ref4 = cond_norm2_ref(*args4)
    assert jnp.allclose(out4.astype(jnp.float32), ref4, atol=5e-2, rtol=2e-2), \
        "mismatch (bf16)"

    print("KERNEL_OK")
</pallas_src>

<mosaic_0001>
module attributes {stable_mosaic.version = 11 : i64} {
  func.func @cond_norm_fma_kernel(%arg0: i32, %arg1: i32, %arg2: memref<1x2x128xf32, #tpu.memory_space<vmem>>, %arg3: memref<1x1x128xf32, #tpu.memory_space<vmem>>, %arg4: memref<1x1x128xf32, #tpu.memory_space<vmem>>, %arg5: memref<1x2x128xf32, #tpu.memory_space<vmem>>) attributes {dimension_semantics = [#tpu.dimension_semantics<parallel>, #tpu.dimension_semantics<parallel>], iteration_bounds = array<i64: 2, 1>, scalar_prefetch = 0 : i64, scratch_operands = 0 : i64, tpu.core_type = #tpu.core_type<tc>, window_params = [{transform_indices = @transform_0, window_bounds = array<i64: 1, 2, 128>}, {transform_indices = @transform_1, window_bounds = array<i64: 1, 1, 128>}, {transform_indices = @transform_2, window_bounds = array<i64: 1, 1, 128>}, {transform_indices = @transform_3, window_bounds = array<i64: 1, 2, 128>}]} {
    %c0 = arith.constant 0 : index
    %c0_0 = arith.constant 0 : index
    %c0_1 = arith.constant 0 : index
    %0 = vector.load %arg2[%c0, %c0_0, %c0_1] : memref<1x2x128xf32, #tpu.memory_space<vmem>>, vector<1x2x128xf32>
    %c0_2 = arith.constant 0 : index
    %c0_3 = arith.constant 0 : index
    %c0_4 = arith.constant 0 : index
    %1 = vector.load %arg3[%c0_2, %c0_3, %c0_4] : memref<1x1x128xf32, #tpu.memory_space<vmem>>, vector<1x1x128xf32>
    %2 = vector.broadcast %1 : vector<1x1x128xf32> to vector<1x2x128xf32>
    %3 = arith.mulf %0, %2 : vector<1x2x128xf32>
    %c0_5 = arith.constant 0 : index
    %c0_6 = arith.constant 0 : index
    %c0_7 = arith.constant 0 : index
    %4 = vector.load %arg4[%c0_5, %c0_6, %c0_7] : memref<1x1x128xf32, #tpu.memory_space<vmem>>, vector<1x1x128xf32>
    %5 = vector.broadcast %4 : vector<1x1x128xf32> to vector<1x2x128xf32>
    %6 = arith.addf %3, %5 : vector<1x2x128xf32>
    %c0_8 = arith.constant 0 : index
    %c0_9 = arith.constant 0 : index
    %c0_10 = arith.constant 0 : index
    %7 = vector.load %arg5[%c0_8, %c0_9, %c0_10] : memref<1x2x128xf32, #tpu.memory_space<vmem>>, vector<1x2x128xf32>
    tpu.vector_store %arg5[%c0_8, %c0_9, %c0_10], %6 {strides = array<i32>} : memref<1x2x128xf32, #tpu.memory_space<vmem>>, vector<1x2x128xf32>,
    return
  }
  func.func @transform_0(%arg0: i32, %arg1: i32) -> (i32, i32, i32) {
    %c0_i32 = arith.constant 0 : i32
    %c0_i32_0 = arith.constant 0 : i32
    return %arg0, %arg1, %c0_i32 : i32, i32, i32
  }
  func.func @transform_1(%arg0: i32, %arg1: i32) -> (i32, i32, i32) {
    %c0_i32 = arith.constant 0 : i32
    %c0_i32_0 = arith.constant 0 : i32
    %c0_i32_1 = arith.constant 0 : i32
    return %arg0, %c0_i32, %c0_i32_0 : i32, i32, i32
  }
  func.func @transform_2(%arg0: i32, %arg1: i32) -> (i32, i32, i32) {
    %c0_i32 = arith.constant 0 : i32
    %c0_i32_0 = arith.constant 0 : i32
    %c0_i32_1 = arith.constant 0 : i32
    return %arg0, %c0_i32, %c0_i32_0 : i32, i32, i32
  }
  func.func @transform_3(%arg0: i32, %arg1: i32) -> (i32, i32, i32) {
    %c0_i32 = arith.constant 0 : i32
    %c0_i32_0 = arith.constant 0 : i32
    return %arg0, %arg1, %c0_i32 : i32, i32, i32
  }
}

</mosaic_0001>

<llo_original>
// kernel: tpu_custom_call.1
$region0: #{tpu_custom_call.1}
  #allocation0 [shape = 'u32[]', space=smem, size = 0x4, offset = 0x4, fixed_abs, tag = 'smem constant byte address 0x4 - core index']
  #allocation1 [shape = 'u32[72,128]{1,0:T(1,128)}', space=vmem, size = 0x9000, scoped, tag = 'internal scratch']
  %s0 = inlined_call_operand.hbm [shape: f32[2,2,128], index: 0, kind: input, shape index: {}]
  %s1 = inlined_call_operand.hbm [shape: f32[2,1,128], index: 1, kind: input, shape index: {}]
  %s2 = inlined_call_operand.hbm [shape: f32[2,1,128], index: 2, kind: input, shape index: {}]
  %s3 = inlined_call_operand.hbm [shape: f32[2,2,128], index: 3, kind: output, shape index: {}]
  %s4 = sld [smem:[#allocation0]]
  $region57: #{tpu_custom_call.1} parent=0
    _
  %s6 = ssub.s32 1, %s4
  %s7 = scalar_select 0, %s6, %s4
  $region1: #{tpu_custom_call.1} parent=0
    #allocation2 [shape = 'u8[2048]{0}', space=vmem, size = 0x800, scoped, tag = 'input window, operand 0']
    #allocation3 [shape = 's32[2]{0}', space=sflag, size = 0x8, scoped, tag = 'scoped memory for tpu_custom_call.1']
    #allocation4 [shape = 's32[2]{0}', space=sflag, size = 0x8, scoped, tag = 'scoped memory for tpu_custom_call.1']
    #allocation5 [shape = 'u8[1024]{0}', space=vmem, size = 0x400, scoped, tag = 'input window, operand 1']
    #allocation6 [shape = 's32[2]{0}', space=sflag, size = 0x8, scoped, tag = 'scoped memory for tpu_custom_call.1']
    #allocation7 [shape = 'u8[1024]{0}', space=vmem, size = 0x400, scoped, tag = 'input window, operand 2']
    #allocation8 [shape = 'u8[2048]{0}', space=vmem, size = 0x800, scoped, tag = 'output window, operand 0']
    %8 = vsyncpa [#allocation3], 0
    %s9 = scalar_lea.sflag [#allocation3], 1
    %10 = vsyncpa %s9, 0
    %11 = vsyncpa [#allocation6], 0
    %s12 = scalar_lea.sflag [#allocation6], 1
    %13 = vsyncpa %s12, 0
    %14 = vsyncpa [#allocation4], 0
    %s15 = scalar_lea.sflag [#allocation4], 1
    %16 = vsyncpa %s15, 0
    loop: start=0, step=1, limit=4
    $region2: #{tpu_custom_call.1} parent=1 // loop_pre_header
      _
    $region3: #{tpu_custom_call.1} parent=1 // loop_header
      %s18 = sphi 0, %s22
      %p19 = scmp.ge.s32.totalorder %s18, 4
      %s25 = sphi 0, %s37
      %s26 = sphi 0, %s33
      %s27 = sphi 0, %s25
      %s28 = sphi 0, %s26
      %s29 = sphi 0, %s27
      %s30 = sphi 0, %s28
      %s42 = sphi 0, %s44
      %s45 = sphi 0, %s42
      %s46 = sphi 0, %s45
      %s62 = sphi 0, %s46
      %s68 = sphi 0, %s70
      %s71 = sphi 0, %s68
      %s72 = sphi 0, %s71
      %s88 = sphi 0, %s72
      %s94 = sphi 0, %s96
      %s97 = sphi 0, %s94
      %s98 = sphi 0, %s97
      %s114 = sphi 0, %s98
      %s122 = sphi 0, %s124
      %s125 = sphi 0, %s122
      %s126 = sphi 0, %s125
      %s142 = sphi 0, %s126
    $region4: #{tpu_custom_call.1} parent=1 // loop_header_branch
      %21 = sbr.rel (%p19) target = $region8
    $region5: #{tpu_custom_call.1} parent=1 // loop_body
      %s23 = ssub.s32 %s18, 1
      %s24 = ssub.s32 %s18, 2
      %s31 = sadd.s32 1, %s26
      %p32 = scmp.ge.s32.totalorder %s31, 1
      %s33 = scalar_select %p32, 0, %s31
      %s34 = sadd.s32 1, %s25
      %s35 = scalar_select %p32, %s34, %s25
      %p36 = scmp.ge.s32.totalorder %s35, 2
      %s37 = scalar_select %p36, 0, %s35
      %s38 = ssub.s32 %s25, %s37
      %s39 = ssub.s32 %s26, %s33
      %s40 = sor.u32 %s38, %s39
      %p41 = scmp.eq.s32.totalorder %s40, 0
      %s43 = sadd.s32 %s42, 1
      %s44 = scalar_select %p41, %s42, %s43
      %p47 = pneg %p41
      %p48 = scmp.eq.s32.totalorder %s18, 1
      %p49 = por %p47, %p48
      %p50 = scmp.ne.s32.totalorder %s42, %s45
      %p51 = scmp.eq.s32.totalorder %s18, 0
      %p52 = por %p50, %p51
      %p53 = scmp.ne.s32.totalorder %s42, %s45
      %p54 = scmp.eq.s32.totalorder %s23, 1
      %p55 = por %p53, %p54
      %p56 = scmp.ne.s32.totalorder %s45, %s46
      %p57 = scmp.eq.s32.totalorder %s23, 0
      %p58 = por %p56, %p57
      %p59 = scmp.ne.s32.totalorder %s45, %s46
      %p60 = scmp.eq.s32.totalorder %s24, 1
      %p61 = por %p59, %p60
      %p63 = scmp.ne.s32.totalorder %s46, %s62
      %p64 = scmp.eq.s32.totalorder %s24, 0
      %p65 = por %p63, %p64
      %s66 = ssub.s32 %s25, %s37
      %p67 = scmp.eq.s32.totalorder %s66, 0
      %s69 = sadd.s32 %s68, 1
      %s70 = scalar_select %p67, %s68, %s69
      %p73 = pneg %p67
      %p74 = scmp.eq.s32.totalorder %s18, 1
      %p75 = por %p73, %p74
      %p76 = scmp.ne.s32.totalorder %s68, %s71
      %p77 = scmp.eq.s32.totalorder %s18, 0
      %p78 = por %p76, %p77
      %p79 = scmp.ne.s32.totalorder %s68, %s71
      %p80 = scmp.eq.s32.totalorder %s23, 1
      %p81 = por %p79, %p80
      %p82 = scmp.ne.s32.totalorder %s71, %s72
      %p83 = scmp.eq.s32.totalorder %s23, 0
      %p84 = por %p82, %p83
      %p85 = scmp.ne.s32.totalorder %s71, %s72
      %p86 = scmp.eq.s32.totalorder %s24, 1
      %p87 = por %p85, %p86
      %p89 = scmp.ne.s32.totalorder %s72, %s88
      %p90 = scmp.eq.s32.totalorder %s24, 0
      %p91 = por %p89, %p90
      %s92 = ssub.s32 %s25, %s37
      %p93 = scmp.eq.s32.totalorder %s92, 0
      %s95 = sadd.s32 %s94, 1
      %s96 = scalar_select %p93, %s94, %s95
      %p99 = pneg %p93
      %p100 = scmp.eq.s32.totalorder %s18, 1
      %p101 = por %p99, %p100
      %p102 = scmp.ne.s32.totalorder %s94, %s97
      %p103 = scmp.eq.s32.totalorder %s18, 0
      %p104 = por %p102, %p103
      %p105 = scmp.ne.s32.totalorder %s94, %s97
      %p106 = scmp.eq.s32.totalorder %s23, 1
      %p107 = por %p105, %p106
      %p108 = scmp.ne.s32.totalorder %s97, %s98
      %p109 = scmp.eq.s32.totalorder %s23, 0
      %p110 = por %p108, %p109
      %p111 = scmp.ne.s32.totalorder %s97, %s98
      %p112 = scmp.eq.s32.totalorder %s24, 1
      %p113 = por %p111, %p112
      %p115 = scmp.ne.s32.totalorder %s98, %s114
      %p116 = scmp.eq.s32.totalorder %s24, 0
      %p117 = por %p115, %p116
      %s118 = ssub.s32 %s25, %s37
      %s119 = ssub.s32 %s26, %s33
      %s120 = sor.u32 %s118, %s119
      %p121 = scmp.eq.s32.totalorder %s120, 0
      %s123 = sadd.s32 %s122, 1
      %s124 = scalar_select %p121, %s122, %s123
      %p127 = pneg %p121
      %p128 = scmp.eq.s32.totalorder %s18, 1
      %p129 = por %p127, %p128
      %p130 = scmp.ne.s32.totalorder %s122, %s125
      %p131 = scmp.eq.s32.totalorder %s18, 0
      %p132 = por %p130, %p131
      %p133 = scmp.ne.s32.totalorder %s122, %s125
      %p134 = scmp.eq.s32.totalorder %s23, 1
      %p135 = por %p133, %p134
      %p136 = scmp.ne.s32.totalorder %s125, %s126
      %p137 = scmp.eq.s32.totalorder %s23, 0
      %p138 = por %p136, %p137
      %p139 = scmp.ne.s32.totalorder %s125, %s126
      %p140 = scmp.eq.s32.totalorder %s24, 1
      %p141 = por %p139, %p140
      %p143 = scmp.ne.s32.totalorder %s126, %s142
      %p144 = scmp.eq.s32.totalorder %s24, 0
      %p145 = por %p143, %p144
      %p146 = scmp.le.s32.totalorder 1, %s18
      %p147 = scmp.lt.s32.totalorder %s18, 3
      %p148 = pnand %p146, %p147
      %p149 = pneg %p148
      // Predicated region
      $region9: #{tpu_custom_call.1} parent=5 // pred_check
        _
      $region10: #{tpu_custom_call.1} parent=5 // pred_check_branch
        %151 = sbr.rel (%p148) target = $region12
      $region11: #{tpu_custom_call.1} parent=5 // pred_region
        %s152 = ssub.s32 %s18, 1
      $region12: #{tpu_custom_call.1} parent=5 // pred_fallthru
        _
      %p153 = scmp.lt.s32.totalorder %s18, 2
      // Predicated region
      $region13: #{tpu_custom_call.1} parent=5 // pred_check
        %p154 = pneg %p153
      $region14: #{tpu_custom_call.1} parent=5 // pred_check_branch
        %156 = sbr.rel (%p154) target = $region16
      $region15: #{tpu_custom_call.1} parent=5 // pred_region
        // Predicated region
        $region17: #{tpu_custom_call.1} parent=15 // pred_check
          %p157 = pneg %p52
        $region18: #{tpu_custom_call.1} parent=15 // pred_check_branch
          %159 = sbr.rel (%p157) target = $region20
        $region19: #{tpu_custom_call.1} parent=15 // pred_region
          %s160 = sand.u32 %s42, 1
          %s161 = scalar_lea.sflag [#allocation3], %s160
          %s162 = sand.u32 %s42, 1
          %s163 = smul.addr %s162, 2
          %s164 = scalar_lea.vmem [#allocation2], %s163
          %166 = vsyncadd %s161, 0
          %s167 = sadd.s32 %s26, %s25
          %s168 = smul.addr %s167, 2
          %s169 = scalar_lea.hbm %s0, %s168
          %s171 = sshll.u32 %s169, 4
          %s172 = int_to_ptr.hbm [resolvable:$true] %s171
          %s173 = sshll.u32 %s164, 4
          %s174 = int_to_ptr.vmem [resolvable:$true] %s173
          %176 = dma.hbm_to_vmem [thread:$0]  %s172, 32, %s174, %s161
        $region20: #{tpu_custom_call.1} parent=15 // pred_fallthru
          _
        // Predicated region
        $region21: #{tpu_custom_call.1} parent=15 // pred_check
          %p177 = pneg %p78
        $region22: #{tpu_custom_call.1} parent=15 // pred_check_branch
          %179 = sbr.rel (%p177) target = $region24
        $region23: #{tpu_custom_call.1} parent=15 // pred_region
          %s180 = sand.u32 %s18, 1
          %s181 = scalar_lea.sflag [#allocation6], %s180
          %s182 = sand.u32 %s68, 1
          %s183 = scalar_lea.vmem [#allocation5], %s182
          %185 = vsyncadd %s181, 0
          %s186 = scalar_lea.hbm %s1, %s25
          %s188 = sshll.u32 %s186, 4
          %s189 = int_to_ptr.hbm [resolvable:$true] %s188
          %s190 = sshll.u32 %s183, 4
          %s191 = int_to_ptr.vmem [resolvable:$true] %s190
          %193 = dma.hbm_to_vmem [thread:$0]  %s189, 16, %s191, %s181
        $region24: #{tpu_custom_call.1} parent=15 // pred_fallthru
          _
        // Predicated region
        $region25: #{tpu_custom_call.1} parent=15 // pred_check
          %p194 = pneg %p104
        $region26: #{tpu_custom_call.1} parent=15 // pred_check_branch
          %196 = sbr.rel (%p194) target = $region28
        $region27: #{tpu_custom_call.1} parent=15 // pred_region
          %s197 = sand.u32 %s18, 1
          %s198 = scalar_lea.sflag [#allocation6], %s197
          %s199 = sand.u32 %s94, 1
          %s200 = scalar_lea.vmem [#allocation7], %s199
          %202 = vsyncadd %s198, 0
          %s203 = scalar_lea.hbm %s2, %s25
          %s205 = sshll.u32 %s203, 4
          %s206 = int_to_ptr.hbm [resolvable:$true] %s205
          %s207 = sshll.u32 %s200, 4
          %s208 = int_to_ptr.vmem [resolvable:$true] %s207
          %210 = dma.hbm_to_vmem [thread:$0]  %s206, 16, %s208, %s198
        $region28: #{tpu_custom_call.1} parent=15 // pred_fallthru
          _
      $region16: #{tpu_custom_call.1} parent=5 // pred_fallthru
        _
      %p211 = scmp.le.s32.totalorder 1, %s18
      %p212 = scmp.lt.s32.totalorder %s18, 3
      %p213 = pnand %p211, %p212
      %p214 = pneg %p213
      // Predicated region
      $region29: #{tpu_custom_call.1} parent=5 // pred_check
        _
      $region30: #{tpu_custom_call.1} parent=5 // pred_check_branch
        %216 = sbr.rel (%p213) target = $region32
      $region31: #{tpu_custom_call.1} parent=5 // pred_region
        %s217 = ssub.s32 %s18, 1
        %s218 = sand.u32 %s45, 1
        %s219 = scalar_lea.sflag [#allocation3], %s218
        %s220 = sand.u32 %s45, 1
        %s221 = smul.addr %s220, 2
        %s222 = scalar_lea.vmem [#allocation2], %s221
        // Predicated region
        $region33: #{tpu_custom_call.1} parent=31 // pred_check
          %p223 = pneg %p58
        $region34: #{tpu_custom_call.1} parent=31 // pred_check_branch
          %225 = sbr.rel (%p223) target = $region36
        $region35: #{tpu_custom_call.1} parent=31 // pred_region
          %227 = dma.done %s219, 32
        $region36: #{tpu_custom_call.1} parent=31 // pred_fallthru
          _
        %s228 = sand.u32 %s23, 1
        %s229 = scalar_lea.sflag [#allocation6], %s228
        %s230 = sand.u32 %s71, 1
        %s231 = scalar_lea.vmem [#allocation5], %s230
        // Predicated region
        $region37: #{tpu_custom_call.1} parent=31 // pred_check
          %p232 = pneg %p84
        $region38: #{tpu_custom_call.1} parent=31 // pred_check_branch
          %234 = sbr.rel (%p232) target = $region40
        $region39: #{tpu_custom_call.1} parent=31 // pred_region
          %236 = dma.done %s229, 16
        $region40: #{tpu_custom_call.1} parent=31 // pred_fallthru
          _
        %s237 = sand.u32 %s23, 1
        %s238 = scalar_lea.sflag [#allocation6], %s237
        %s239 = sand.u32 %s97, 1
        %s240 = scalar_lea.vmem [#allocation7], %s239
        // Predicated region
        $region41: #{tpu_custom_call.1} parent=31 // pred_check
          %p241 = pneg %p110
        $region42: #{tpu_custom_call.1} parent=31 // pred_check_branch
          %243 = sbr.rel (%p241) target = $region44
        $region43: #{tpu_custom_call.1} parent=31 // pred_region
          %245 = dma.done %s238, 16
        $region44: #{tpu_custom_call.1} parent=31 // pred_fallthru
          _
        %s246 = sand.u32 %s45, 1
        %s247 = scalar_lea.sflag [#allocation3], %s246
        %s248 = sand.u32 %s45, 1
        %s249 = smul.addr %s248, 2
        %s250 = scalar_lea.vmem [#allocation2], %s249
        %p251 = pneg %p58
        %p252 = pneg %p55
        %s253 = sand.u32 %s23, 1
        %s254 = scalar_lea.sflag [#allocation6], %s253
        %s255 = sand.u32 %s71, 1
        %s256 = scalar_lea.vmem [#allocation5], %s255
        %p257 = pneg %p84
        %p258 = pneg %p81
        %s259 = sand.u32 %s23, 1
        %s260 = scalar_lea.sflag [#allocation6], %s259
        %s261 = sand.u32 %s97, 1
        %s262 = scalar_lea.vmem [#allocation7], %s261
        %p263 = pneg %p110
        %p264 = pneg %p107
        %p265 = pneg %p138
        %p266 = pneg %p135
        %s267 = sand.u32 %s125, 1
        %s268 = scalar_lea.sflag [#allocation4], %s267
        %s269 = sand.u32 %s125, 1
        %s270 = smul.addr %s269, 2
        %s271 = scalar_lea.vmem [#allocation8], %s270
        %v272 = vld [vmem:[%s222] sm:$0x3]
        %v273 = vld [vmem:[%s231] sm:$0x1]
        %v275 = vperm.slane %v273, 0
        %v277 = vmul.f32 %v272, %v275
        %v278 = vld [vmem:[%s240] sm:$0x1]
        %v280 = vperm.slane %v278, 0
        %v282 = vadd.f32 %v277, %v280
        %283 = vst [vmem:[%s271] sm:$0x3] %v282
        %s284 = sand.u32 %s125, 1
        %s285 = scalar_lea.sflag [#allocation4], %s284
        %s286 = sand.u32 %s125, 1
        %s287 = smul.addr %s286, 2
        %s288 = scalar_lea.vmem [#allocation8], %s287
        // Predicated region
        $region45: #{tpu_custom_call.1} parent=31 // pred_check
          %p289 = pneg %p135
        $region46: #{tpu_custom_call.1} parent=31 // pred_check_branch
          %291 = sbr.rel (%p289) target = $region48
        $region47: #{tpu_custom_call.1} parent=31 // pred_region
          %293 = vsyncadd %s285, 0
          %s294 = sadd.s32 %s28, %s27
          %s295 = smul.addr %s294, 2
          %s296 = scalar_lea.hbm %s3, %s295
          %s298 = sshll.u32 %s288, 4
          %s299 = int_to_ptr.vmem [resolvable:$true] %s298
          %s300 = sshll.u32 %s296, 4
          %s301 = int_to_ptr.hbm [resolvable:$true] %s300
          %303 = dma.vmem_to_hbm [thread:$0]  %s299, 32, %s301, %s285
        $region48: #{tpu_custom_call.1} parent=31 // pred_fallthru
          _
      $region32: #{tpu_custom_call.1} parent=5 // pred_fallthru
        _
      %p304 = scmp.le.s32.totalorder 2, %s18
      // Predicated region
      $region49: #{tpu_custom_call.1} parent=5 // pred_check
        %p305 = pneg %p304
      $region50: #{tpu_custom_call.1} parent=5 // pred_check_branch
        %307 = sbr.rel (%p305) target = $region52
      $region51: #{tpu_custom_call.1} parent=5 // pred_region
        %s308 = ssub.s32 %s18, 2
        // Predicated region
        $region53: #{tpu_custom_call.1} parent=51 // pred_check
          %p309 = pneg %p141
        $region54: #{tpu_custom_call.1} parent=51 // pred_check_branch
          %311 = sbr.rel (%p309) target = $region56
        $region55: #{tpu_custom_call.1} parent=51 // pred_region
          %s312 = sand.u32 %s126, 1
          %s313 = scalar_lea.sflag [#allocation4], %s312
          %s314 = sand.u32 %s126, 1
          %s315 = smul.addr %s314, 2
          %s316 = scalar_lea.vmem [#allocation8], %s315
          %318 = dma.done %s313, 32
        $region56: #{tpu_custom_call.1} parent=51 // pred_fallthru
          _
      $region52: #{tpu_custom_call.1} parent=5 // pred_fallthru
        _
    $region6: #{tpu_custom_call.1} parent=1 // loop_footer
      %s22 = sadd.s32 1, %s18
    $region7: #{tpu_custom_call.1} parent=1 // loop_footer_branch
      %17 = sbr.rel target = $region3
    $region8: #{tpu_custom_call.1} parent=1 // loop_exit
      _
    %319 = vsyncpa [#allocation3], 1
    %s320 = scalar_lea.sflag [#allocation3], 1
    %321 = vsyncpa %s320, 1
    %322 = vsyncpa [#allocation6], 1
    %s323 = scalar_lea.sflag [#allocation6], 1
    %324 = vsyncpa %s323, 1
    %325 = vsyncpa [#allocation4], 1
    %s326 = scalar_lea.sflag [#allocation4], 1
    %327 = vsyncpa %s326, 1

</llo_original>
